<compile_context>
chip_gen: v5e
topology: v5e:2x2
jax: 0.10.0
libtpu: 0.0.40
codegen_flags: <defaults>
</compile_context>

<pallas_src>
import functools

import jax
import jax.numpy as jnp
from jax.experimental import pallas as pl
from jax.experimental.pallas import tpu as pltpu


def _sigmoid_bin_kernel(pred_ref, out_ref, *, bins, reg_scale, step,
                        vmin, vmax, use_fw_regression):
    # pred_ref: (L, TS, 128) channel-first tile (native dtype); out_ref: (TS, 128).
    bin_count = len(bins)

    # Unrolled first-max scan over bin channels 1..bin_count.  Every operand is
    # a dense (TS, 128) tile; strict '>' keeps first-max tie-breaking.
    run_max = pred_ref[1].astype(jnp.float32)                  # (TS, 128)
    bias = jnp.full_like(run_max, bins[0])
    for k in range(1, bin_count):
        pk = pred_ref[k + 1].astype(jnp.float32)               # (TS, 128)
        better = pk > run_max
        run_max = jnp.where(better, pk, run_max)
        bias = jnp.where(better, jnp.float32(bins[k]), bias)

    if use_fw_regression:
        pred0 = pred_ref[0].astype(jnp.float32)                # (TS, 128)
        result = (pred0 * reg_scale - reg_scale / 2.0) * step + bias
    else:
        result = bias

    out_ref[...] = jnp.clip(result, vmin, vmax).astype(out_ref.dtype)


class SigmoidBinPallas:
    """Forward pass of SigmoidBin implemented with a Pallas TPU kernel."""

    def __init__(self, bin_count=10, min=0.0, max=1.0, reg_scale=2.0,
                 use_fw_regression=True):
        self.bin_count = bin_count
        self.length = bin_count + 1
        self.min = float(min)
        self.max = float(max)
        self.scale = float(max - min)
        self.reg_scale = float(reg_scale)
        self.step = self.scale / bin_count
        self.use_fw_regression = use_fw_regression
        # Same values as torch.range(start, end + 1e-4, step): bin_count
        # inclusive centers, kept as Python floats -> compile-time constants.
        start = self.min + self.scale / 2.0 / bin_count
        self.bins = tuple(start + self.step * k for k in range(bin_count))
        # Array copy only used by the pure-JAX reference below.
        self.bins_arr = jnp.asarray(self.bins, dtype=jnp.float32)

    @staticmethod
    def _pick_ts(s, target=512):
        # Sublane tile over the S (= N_pad/128) axis.
        #  * s <= 8: use the full extent (block dim == array dim is allowed).
        #  * otherwise: a multiple of 8, never larger than s (last block may be
        #    ragged; Pallas masks it), target 512 (64K outputs/step, ~6.3 MB
        #    double-buffered VMEM -> fits v5e's 16 MiB default scoped limit).
        #  * halve once if the grid would be a single step so both v7x
        #    TensorCores get work.
        if s <= 8:
            return s
        ts = min(target, (s // 8) * 8)
        if pl.cdiv(s, ts) < 2:
            ts = max(8, ((ts // 2) // 8) * 8)
        return ts

    def __call__(self, pred):
        assert pred.shape[-1] == self.length, (
            f"pred.shape[-1]={pred.shape[-1]} != self.length={self.length}")
        lead_shape = pred.shape[:-1]
        n = 1
        for d in lead_shape:
            n *= d
        length = self.length

        # Pad N only to the next multiple of 128 (needed for the (L, S, 128)
        # channel-first reshape); at most 127 wasted rows.
        n128 = pl.cdiv(n, 128) * 128
        s = n128 // 128

        pred2 = pred.reshape(n, length)
        if n128 != n:
            pred2 = jnp.pad(pred2, ((0, n128 - n), (0, 0)))
        # Channel-first slab (L, S, 128); lane axis carries 128 consecutive rows.
        pred_t = pred2.reshape(s, 128, length).transpose(2, 0, 1)

        ts = self._pick_ts(s)
        grid = (pl.cdiv(s, ts),)

        kernel = functools.partial(
            _sigmoid_bin_kernel,
            bins=self.bins,
            reg_scale=self.reg_scale,
            step=self.step,
            vmin=self.min,
            vmax=self.max,
            use_fw_regression=self.use_fw_regression,
        )

        itemsize = jnp.dtype(pred.dtype).itemsize
        cost = pl.CostEstimate(
            flops=32 * n128,
            transcendentals=0,
            bytes_accessed=n128 * (length * itemsize + itemsize),
        )

        out = pl.pallas_call(
            kernel,
            out_shape=jax.ShapeDtypeStruct((s, 128), pred.dtype),
            grid_spec=pltpu.PrefetchScalarGridSpec(
                num_scalar_prefetch=0,
                grid=grid,
                in_specs=[pl.BlockSpec((length, ts, 128), lambda i: (0, i, 0))],
                out_specs=pl.BlockSpec((ts, 128), lambda i: (i, 0)),
            ),
            compiler_params=pltpu.CompilerParams(
                dimension_semantics=("parallel",)),
            cost_estimate=cost,
        )(pred_t)

        # NOTE: the trailing [:n] slice is what discards the (garbage) padded
        # rows beyond N; keep it if the padding logic above ever changes.
        return out.reshape(-1)[:n].reshape(lead_shape)


def _reference_forward(mod: SigmoidBinPallas, pred):
    pred = pred.astype(jnp.float32)
    pred_reg = (pred[..., 0] * mod.reg_scale - mod.reg_scale / 2.0) * mod.step
    pred_bin = pred[..., 1:1 + mod.bin_count]
    bin_idx = jnp.argmax(pred_bin, axis=-1)
    bin_bias = mod.bins_arr[bin_idx]
    if mod.use_fw_regression:
        result = pred_reg + bin_bias
    else:
        result = bin_bias
    return jnp.clip(result, mod.min, mod.max)


if __name__ == "__main__":
    key = jax.random.PRNGKey(0)
    mod = SigmoidBinPallas(bin_count=10, min=0.0, max=1.0, reg_scale=2.0)
    k1, k2, k3 = jax.random.split(key, 3)

    # Small: leading dims (2, 4, 16) -> N = 128 (single 128-lane column, S = 1).
    x = jax.random.normal(k1, (2, 4, 16, mod.length), dtype=jnp.float32)
    out = jax.block_until_ready(mod(x))
    ref = _reference_forward(mod, x)
    assert out.shape == x.shape[:-1]
    assert jnp.allclose(out, ref, atol=1e-5, rtol=1e-5), "mismatch vs reference"

    # Non-128-divisible N exercises the lane-padding path (N = 105).
    x2 = jax.random.normal(k2, (3, 5, 7, mod.length), dtype=jnp.float32)
    out2 = jax.block_until_ready(mod(x2))
    ref2 = _reference_forward(mod, x2)
    assert out2.shape == x2.shape[:-1]
    assert jnp.allclose(out2, ref2, atol=1e-5, rtol=1e-5), "mismatch vs reference (padded)"

    # Medium: N = 1800 -> S = 15, TS = 8, grid = (2,) with a ragged last block.
    x3 = jax.random.normal(k3, (2, 9, 100, mod.length), dtype=jnp.float32)
    out3 = jax.block_until_ready(mod(x3))
    ref3 = _reference_forward(mod, x3)
    assert out3.shape == x3.shape[:-1]
    assert jnp.allclose(out3, ref3, atol=1e-5, rtol=1e-5), "mismatch vs reference (multi-block)"

    print("KERNEL_OK")
</pallas_src>

<mosaic_0001>
module attributes {stable_mosaic.version = 11 : i64} {
  func.func @_sigmoid_bin_kernel(%arg0: i32, %arg1: memref<11x1x128xf32, #tpu.memory_space<vmem>>, %arg2: memref<1x128xf32, #tpu.memory_space<vmem>>) attributes {dimension_semantics = [#tpu.dimension_semantics<parallel>], iteration_bounds = array<i64: 1>, scalar_prefetch = 0 : i64, scratch_operands = 0 : i64, tpu.core_type = #tpu.core_type<tc>, window_params = [{transform_indices = @transform_0, window_bounds = array<i64: 11, 1, 128>}, {transform_indices = @transform_1, window_bounds = array<i64: 1, 128>}]} {
    %c1 = arith.constant 1 : index
    %c0 = arith.constant 0 : index
    %c0_0 = arith.constant 0 : index
    %0 = vector.load %arg1[%c1, %c0, %c0_0] : memref<11x1x128xf32, #tpu.memory_space<vmem>>, vector<1x1x128xf32>
    %1 = vector.shape_cast %0 : vector<1x1x128xf32> to vector<1x128xf32>
    %cst = arith.constant 5.000000e-02 : f32
    %2 = vector.broadcast %cst : f32 to vector<1x128xf32>
    %c2 = arith.constant 2 : index
    %c0_1 = arith.constant 0 : index
    %c0_2 = arith.constant 0 : index
    %3 = vector.load %arg1[%c2, %c0_1, %c0_2] : memref<11x1x128xf32, #tpu.memory_space<vmem>>, vector<1x1x128xf32>
    %4 = vector.shape_cast %3 : vector<1x1x128xf32> to vector<1x128xf32>
    %5 = arith.cmpf ogt, %4, %1 : vector<1x128xf32>
    %6 = arith.select %5, %4, %1 : vector<1x128xi1>, vector<1x128xf32>
    %cst_3 = arith.constant 1.500000e-01 : f32
    %7 = vector.broadcast %cst_3 : f32 to vector<1x128xf32>
    %8 = arith.select %5, %7, %2 : vector<1x128xi1>, vector<1x128xf32>
    %c3 = arith.constant 3 : index
    %c0_4 = arith.constant 0 : index
    %c0_5 = arith.constant 0 : index
    %9 = vector.load %arg1[%c3, %c0_4, %c0_5] : memref<11x1x128xf32, #tpu.memory_space<vmem>>, vector<1x1x128xf32>
    %10 = vector.shape_cast %9 : vector<1x1x128xf32> to vector<1x128xf32>
    %11 = arith.cmpf ogt, %10, %6 : vector<1x128xf32>
    %12 = arith.select %11, %10, %6 : vector<1x128xi1>, vector<1x128xf32>
    %cst_6 = arith.constant 2.500000e-01 : f32
    %13 = vector.broadcast %cst_6 : f32 to vector<1x128xf32>
    %14 = arith.select %11, %13, %8 : vector<1x128xi1>, vector<1x128xf32>
    %c4 = arith.constant 4 : index
    %c0_7 = arith.constant 0 : index
    %c0_8 = arith.constant 0 : index
    %15 = vector.load %arg1[%c4, %c0_7, %c0_8] : memref<11x1x128xf32, #tpu.memory_space<vmem>>, vector<1x1x128xf32>
    %16 = vector.shape_cast %15 : vector<1x1x128xf32> to vector<1x128xf32>
    %17 = arith.cmpf ogt, %16, %12 : vector<1x128xf32>
    %18 = arith.select %17, %16, %12 : vector<1x128xi1>, vector<1x128xf32>
    %cst_9 = arith.constant 3.500000e-01 : f32
    %19 = vector.broadcast %cst_9 : f32 to vector<1x128xf32>
    %20 = arith.select %17, %19, %14 : vector<1x128xi1>, vector<1x128xf32>
    %c5 = arith.constant 5 : index
    %c0_10 = arith.constant 0 : index
    %c0_11 = arith.constant 0 : index
    %21 = vector.load %arg1[%c5, %c0_10, %c0_11] : memref<11x1x128xf32, #tpu.memory_space<vmem>>, vector<1x1x128xf32>
    %22 = vector.shape_cast %21 : vector<1x1x128xf32> to vector<1x128xf32>
    %23 = arith.cmpf ogt, %22, %18 : vector<1x128xf32>
    %24 = arith.select %23, %22, %18 : vector<1x128xi1>, vector<1x128xf32>
    %cst_12 = arith.constant 4.500000e-01 : f32
    %25 = vector.broadcast %cst_12 : f32 to vector<1x128xf32>
    %26 = arith.select %23, %25, %20 : vector<1x128xi1>, vector<1x128xf32>
    %c6 = arith.constant 6 : index
    %c0_13 = arith.constant 0 : index
    %c0_14 = arith.constant 0 : index
    %27 = vector.load %arg1[%c6, %c0_13, %c0_14] : memref<11x1x128xf32, #tpu.memory_space<vmem>>, vector<1x1x128xf32>
    %28 = vector.shape_cast %27 : vector<1x1x128xf32> to vector<1x128xf32>
    %29 = arith.cmpf ogt, %28, %24 : vector<1x128xf32>
    %30 = arith.select %29, %28, %24 : vector<1x128xi1>, vector<1x128xf32>
    %cst_15 = arith.constant 5.500000e-01 : f32
    %31 = vector.broadcast %cst_15 : f32 to vector<1x128xf32>
    %32 = arith.select %29, %31, %26 : vector<1x128xi1>, vector<1x128xf32>
    %c7 = arith.constant 7 : index
    %c0_16 = arith.constant 0 : index
    %c0_17 = arith.constant 0 : index
    %33 = vector.load %arg1[%c7, %c0_16, %c0_17] : memref<11x1x128xf32, #tpu.memory_space<vmem>>, vector<1x1x128xf32>
    %34 = vector.shape_cast %33 : vector<1x1x128xf32> to vector<1x128xf32>
    %35 = arith.cmpf ogt, %34, %30 : vector<1x128xf32>
    %36 = arith.select %35, %34, %30 : vector<1x128xi1>, vector<1x128xf32>
    %cst_18 = arith.constant 6.500000e-01 : f32
    %37 = vector.broadcast %cst_18 : f32 to vector<1x128xf32>
    %38 = arith.select %35, %37, %32 : vector<1x128xi1>, vector<1x128xf32>
    %c8 = arith.constant 8 : index
    %c0_19 = arith.constant 0 : index
    %c0_20 = arith.constant 0 : index
    %39 = vector.load %arg1[%c8, %c0_19, %c0_20] : memref<11x1x128xf32, #tpu.memory_space<vmem>>, vector<1x1x128xf32>
    %40 = vector.shape_cast %39 : vector<1x1x128xf32> to vector<1x128xf32>
    %41 = arith.cmpf ogt, %40, %36 : vector<1x128xf32>
    %42 = arith.select %41, %40, %36 : vector<1x128xi1>, vector<1x128xf32>
    %cst_21 = arith.constant 7.500000e-01 : f32
    %43 = vector.broadcast %cst_21 : f32 to vector<1x128xf32>
    %44 = arith.select %41, %43, %38 : vector<1x128xi1>, vector<1x128xf32>
    %c9 = arith.constant 9 : index
    %c0_22 = arith.constant 0 : index
    %c0_23 = arith.constant 0 : index
    %45 = vector.load %arg1[%c9, %c0_22, %c0_23] : memref<11x1x128xf32, #tpu.memory_space<vmem>>, vector<1x1x128xf32>
    %46 = vector.shape_cast %45 : vector<1x1x128xf32> to vector<1x128xf32>
    %47 = arith.cmpf ogt, %46, %42 : vector<1x128xf32>
    %48 = arith.select %47, %46, %42 : vector<1x128xi1>, vector<1x128xf32>
    %cst_24 = arith.constant 8.500000e-01 : f32
    %49 = vector.broadcast %cst_24 : f32 to vector<1x128xf32>
    %50 = arith.select %47, %49, %44 : vector<1x128xi1>, vector<1x128xf32>
    %c10 = arith.constant 10 : index
    %c0_25 = arith.constant 0 : index
    %c0_26 = arith.constant 0 : index
    %51 = vector.load %arg1[%c10, %c0_25, %c0_26] : memref<11x1x128xf32, #tpu.memory_space<vmem>>, vector<1x1x128xf32>
    %52 = vector.shape_cast %51 : vector<1x1x128xf32> to vector<1x128xf32>
    %53 = arith.cmpf ogt, %52, %48 : vector<1x128xf32>
    %cst_27 = arith.constant 0.949999988 : f32
    %54 = vector.broadcast %cst_27 : f32 to vector<1x128xf32>
    %55 = arith.select %53, %54, %50 : vector<1x128xi1>, vector<1x128xf32>
    %c0_28 = arith.constant 0 : index
    %c0_29 = arith.constant 0 : index
    %c0_30 = arith.constant 0 : index
    %56 = vector.load %arg1[%c0_28, %c0_29, %c0_30] : memref<11x1x128xf32, #tpu.memory_space<vmem>>, vector<1x1x128xf32>
    %57 = vector.shape_cast %56 : vector<1x1x128xf32> to vector<1x128xf32>
    %cst_31 = arith.constant 2.000000e+00 : f32
    %58 = vector.broadcast %cst_31 : f32 to vector<1x128xf32>
    %59 = arith.mulf %57, %58 : vector<1x128xf32>
    %cst_32 = arith.constant 1.000000e+00 : f32
    %60 = vector.broadcast %cst_32 : f32 to vector<1x128xf32>
    %61 = arith.subf %59, %60 : vector<1x128xf32>
    %cst_33 = arith.constant 1.000000e-01 : f32
    %62 = vector.broadcast %cst_33 : f32 to vector<1x128xf32>
    %63 = arith.mulf %61, %62 : vector<1x128xf32>
    %64 = arith.addf %63, %55 : vector<1x128xf32>
    %cst_34 = arith.constant 0.000000e+00 : f32
    %cst_35 = arith.constant 1.000000e+00 : f32
    %65 = vector.broadcast %cst_34 : f32 to vector<1x128xf32>
    %66 = arith.maximumf %65, %64 : vector<1x128xf32>
    %67 = vector.broadcast %cst_35 : f32 to vector<1x128xf32>
    %68 = arith.minimumf %67, %66 : vector<1x128xf32>
    %c0_36 = arith.constant 0 : index
    %c0_37 = arith.constant 0 : index
    %69 = vector.load %arg2[%c0_36, %c0_37] : memref<1x128xf32, #tpu.memory_space<vmem>>, vector<1x128xf32>
    tpu.vector_store %arg2[%c0_36, %c0_37], %68 {strides = array<i32>} : memref<1x128xf32, #tpu.memory_space<vmem>>, vector<1x128xf32>,
    return
  }
  func.func @transform_0(%arg0: i32) -> (i32, i32, i32) {
    %c0_i32 = arith.constant 0 : i32
    %c0_i32_0 = arith.constant 0 : i32
    %c0_i32_1 = arith.constant 0 : i32
    return %c0_i32, %arg0, %c0_i32_0 : i32, i32, i32
  }
  func.func @transform_1(%arg0: i32) -> (i32, i32) {
    %c0_i32 = arith.constant 0 : i32
    %c0_i32_0 = arith.constant 0 : i32
    return %arg0, %c0_i32 : i32, i32
  }
}

</mosaic_0001>

<llo_original>
// kernel: tpu_custom_call.1
$region0: #{tpu_custom_call.1}
  #allocation0 [shape = 'u32[]', space=smem, size = 0x4, offset = 0x4, fixed_abs, tag = 'smem constant byte address 0x4 - core index']
  #allocation1 [shape = 'u32[72,128]{1,0:T(1,128)}', space=vmem, size = 0x9000, scoped, tag = 'internal scratch']
  %s0 = inlined_call_operand.hbm [shape: f32[11,1,128], index: 0, kind: input, shape index: {}]
  %s1 = inlined_call_operand.hbm [shape: f32[1,128], index: 1, kind: output, shape index: {}]
  %s2 = sld [smem:[#allocation0]]
  $region18: #{tpu_custom_call.1} parent=0
    _
  %s4 = ssub.s32 1, %s2
  %s5 = scalar_select 0, %s4, %s2
  $region1: #{tpu_custom_call.1} parent=0
    #allocation2 [shape = 'u8[5632]{0}', space=vmem, size = 0x1800, scoped, tag = 'input window, operand 0, single buffered']
    #allocation3 [shape = 's32[1]{0}', space=sflag, size = 0x4, scoped, tag = 'scoped memory for tpu_custom_call.1']
    #allocation4 [shape = 's32[1]{0}', space=sflag, size = 0x4, scoped, tag = 'scoped memory for tpu_custom_call.1']
    #allocation5 [shape = 'u8[512]{0}', space=vmem, size = 0x400, scoped, tag = 'output window, operand 0, single buffered']
    %6 = vsyncpa [#allocation3], 0
    %7 = vsyncpa [#allocation4], 0
    // Predicated region
    $region2: #{tpu_custom_call.1} parent=1 // pred_check
      _
    $region3: #{tpu_custom_call.1} parent=1 // pred_check_branch
      %9 = sbr.rel (0) target = $region5
    $region4: #{tpu_custom_call.1} parent=1 // pred_region
      %11 = vsyncadd [#allocation3], 0
      %s12 = sshll.u32 %s0, 4
      %s13 = int_to_ptr.hbm [resolvable:$true] %s12
      %s14 = sshll.u32 [#allocation2], 4
      %s15 = int_to_ptr.vmem [resolvable:$true] %s14
      %20 = dma.hbm_to_vmem [thread:$0]  %s13, 176, %s15, [#allocation3], 16, 16, 1
    $region5: #{tpu_custom_call.1} parent=1 // pred_fallthru
      _
    // Predicated region
    $region6: #{tpu_custom_call.1} parent=1 // pred_check
      _
    $region7: #{tpu_custom_call.1} parent=1 // pred_check_branch
      %22 = sbr.rel (0) target = $region9
    $region8: #{tpu_custom_call.1} parent=1 // pred_region
      %24 = dma.done [#allocation3], 176
    $region9: #{tpu_custom_call.1} parent=1 // pred_fallthru
      _
    %s25 = scalar_lea.vmem [#allocation2], 1
    %v26 = vld [vmem:[%s25] sm:$0x1]
    %s27 = scalar_lea.vmem [#allocation2], 2
    %v28 = vld [vmem:[%s27] sm:$0x1]
    %vm29 = vcmp.gt.f32.partialorder %v28, %v26
    %v30 = vsel %vm29, %v28, %v26
    %v31 = vsel %vm29, 0.15, 0.05
    %s32 = scalar_lea.vmem [#allocation2], 3
    %v33 = vld [vmem:[%s32] sm:$0x1]
    %vm34 = vcmp.gt.f32.partialorder %v33, %v30
    %v35 = vsel %vm34, %v33, %v30
    %v36 = vsel %vm34, 0.25, %v31
    %s37 = scalar_lea.vmem [#allocation2], 4
    %v38 = vld [vmem:[%s37] sm:$0x1]
    %vm39 = vcmp.gt.f32.partialorder %v38, %v35
    %v40 = vsel %vm39, %v38, %v35
    %v41 = vsel %vm39, 0.35, %v36
    %s42 = scalar_lea.vmem [#allocation2], 5
    %v43 = vld [vmem:[%s42] sm:$0x1]
    %vm44 = vcmp.gt.f32.partialorder %v43, %v40
    %v45 = vsel %vm44, %v43, %v40
    %v46 = vsel %vm44, 0.45, %v41
    %s47 = scalar_lea.vmem [#allocation2], 6
    %v48 = vld [vmem:[%s47] sm:$0x1]
    %vm49 = vcmp.gt.f32.partialorder %v48, %v45
    %v50 = vsel %vm49, %v48, %v45
    %v51 = vsel %vm49, 0.55, %v46
    %s52 = scalar_lea.vmem [#allocation2], 7
    %v53 = vld [vmem:[%s52] sm:$0x1]
    %vm54 = vcmp.gt.f32.partialorder %v53, %v50
    %v55 = vsel %vm54, %v53, %v50
    %v56 = vsel %vm54, 0.65, %v51
    %s57 = scalar_lea.vmem [#allocation2], 8
    %v58 = vld [vmem:[%s57] sm:$0x1]
    %vm59 = vcmp.gt.f32.partialorder %v58, %v55
    %v60 = vsel %vm59, %v58, %v55
    %v61 = vsel %vm59, 0.75, %v56
    %s62 = scalar_lea.vmem [#allocation2], 9
    %v63 = vld [vmem:[%s62] sm:$0x1]
    %vm64 = vcmp.gt.f32.partialorder %v63, %v60
    %v65 = vsel %vm64, %v63, %v60
    %v66 = vsel %vm64, 0.85, %v61
    %s67 = scalar_lea.vmem [#allocation2], 10
    %v68 = vld [vmem:[%s67] sm:$0x1]
    %vm69 = vcmp.gt.f32.partialorder %v68, %v65
    %v70 = vsel %vm69, 0.95, %v66
    %v71 = vld [vmem:[#allocation2] sm:$0x1]
    %v72 = vmul.f32 %v71, 2.0
    %v73 = vsub.f32 %v72, 1.0
    %v74 = vmul.f32 %v73, 0.1
    %v75 = vadd.f32 %v74, %v70
    %v76 = vmax.f32 %v75, 0.0
    %v77 = vmin.f32 %v76, 1.0
    %78 = vst [vmem:[#allocation5] sm:$0x1] %v77
    // Predicated region
    $region10: #{tpu_custom_call.1} parent=1 // pred_check
      _
    $region11: #{tpu_custom_call.1} parent=1 // pred_check_branch
      %80 = sbr.rel (0) target = $region13
    $region12: #{tpu_custom_call.1} parent=1 // pred_region
      %82 = vsyncadd [#allocation4], 0
      %s84 = sshll.u32 [#allocation5], 4
      %s85 = int_to_ptr.vmem [resolvable:$true] %s84
      %s86 = sshll.u32 %s1, 4
      %s87 = int_to_ptr.hbm [resolvable:$true] %s86
      %89 = dma.vmem_to_hbm [thread:$0]  %s85, 16, %s87, [#allocation4]
    $region13: #{tpu_custom_call.1} parent=1 // pred_fallthru
      _
    // Predicated region
    $region14: #{tpu_custom_call.1} parent=1 // pred_check
      _
    $region15: #{tpu_custom_call.1} parent=1 // pred_check_branch
      %91 = sbr.rel (0) target = $region17
    $region16: #{tpu_custom_call.1} parent=1 // pred_region
      %93 = dma.done [#allocation4], 16
    $region17: #{tpu_custom_call.1} parent=1 // pred_fallthru
      _
    %94 = vsyncpa [#allocation3], 1
    %95 = vsyncpa [#allocation4], 1

</llo_original>
